<compile_context>
chip_gen: v6e
topology: v6e:2x2x1
jax: 0.10.0
libtpu: 0.0.40
codegen_flags: <defaults>
</compile_context>

<pallas_src>
import jax
import jax.numpy as jnp
from jax.experimental import pallas as pl
from jax.experimental.pallas import tpu as pltpu

HIDDEN_SIZE = 64
KAPPA = 8
INPUT_SIZE = KAPPA + 1   # 9
OUTPUT_SIZE = 9

_LANE = 128              # TPU lane width
_MAX_BATCH_TILE = 1024   # batch lanes per grid step (review: >=512, 1024-2048)


def actor_kernel(x_ref, w1_ref, b1_ref, w2_ref, b2_ref, o_ref):
    # Transposed, lane-dense layout (batch on lanes):
    #   x:  (IN, TB)    w1: (HID, IN)   b1: (HID, 1)
    #   w2: (OUT, HID)  b2: (OUT, 1)    o:  (OUT, TB)
    x = x_ref[...]
    h = jnp.dot(w1_ref[...], x, preferred_element_type=jnp.float32) + b1_ref[...]
    h = jnp.maximum(h, 0.0)                                  # ReLU (f32 VPU)
    y = jnp.dot(w2_ref[...], h, preferred_element_type=jnp.float32) + b2_ref[...]
    o_ref[...] = y.astype(o_ref.dtype)


def _round_up(x, m):
    return (x + m - 1) // m * m


def actor_forward(x, w1, b1, w2, b2):
    """Forward pass of Actor.

    x:  (B, 9)             float32 (or bfloat16)
    w1: (64, 9),  b1: (64,)   -- PyTorch nn.Linear layout (out, in)
    w2: (9, 64),  b2: (9,)
    returns (B, 9) float32
    """
    B = x.shape[0]

    # Lane-dense layout: batch goes on the 128-lane axis.
    x_t = x.T                                                  # (IN, B)
    tb = min(_MAX_BATCH_TILE, _round_up(B, _LANE))
    b_pad = _round_up(B, tb)
    if b_pad != B:
        x_t = jnp.pad(x_t, ((0, 0), (0, b_pad - B)))

    grid = (b_pad // tb,)

    cost = pl.CostEstimate(
        flops=2 * b_pad * (INPUT_SIZE * HIDDEN_SIZE + HIDDEN_SIZE * OUTPUT_SIZE),
        transcendentals=0,
        bytes_accessed=4 * (b_pad * (INPUT_SIZE + OUTPUT_SIZE)
                            + HIDDEN_SIZE * (INPUT_SIZE + OUTPUT_SIZE + 1)
                            + OUTPUT_SIZE),
    )

    out_t = pl.pallas_call(
        actor_kernel,
        out_shape=jax.ShapeDtypeStruct((OUTPUT_SIZE, b_pad), jnp.float32),
        grid=grid,
        in_specs=[
            # x: tiled along batch (lanes), pipelined per grid step.
            pl.BlockSpec((INPUT_SIZE, tb), lambda i: (0, i)),
            # weights / biases: constant index_map -> VMEM-resident, DMA'd once.
            pl.BlockSpec((HIDDEN_SIZE, INPUT_SIZE), lambda i: (0, 0)),
            pl.BlockSpec((HIDDEN_SIZE, 1), lambda i: (0, 0)),
            pl.BlockSpec((OUTPUT_SIZE, HIDDEN_SIZE), lambda i: (0, 0)),
            pl.BlockSpec((OUTPUT_SIZE, 1), lambda i: (0, 0)),
        ],
        out_specs=pl.BlockSpec((OUTPUT_SIZE, tb), lambda i: (0, i)),
        compiler_params=pltpu.CompilerParams(
            dimension_semantics=("parallel",),   # shards batch tiles over v7x's 2 TCs
        ),
        cost_estimate=cost,
    )(x_t, w1, b1.reshape(HIDDEN_SIZE, 1), w2, b2.reshape(OUTPUT_SIZE, 1))

    return out_t[:, :B].T                                      # back to (B, OUT)


def init_params(key):
    """Deterministic init mimicking PyTorch's default Linear init:
    U(-1/sqrt(fan_in), 1/sqrt(fan_in)), stored in PyTorch (out, in) layout."""
    k1, k2, k3, k4 = jax.random.split(key, 4)
    bound1 = 1.0 / jnp.sqrt(float(INPUT_SIZE))
    bound2 = 1.0 / jnp.sqrt(float(HIDDEN_SIZE))
    w1 = jax.random.uniform(k1, (HIDDEN_SIZE, INPUT_SIZE), jnp.float32,
                            minval=-bound1, maxval=bound1)
    b1 = jax.random.uniform(k2, (HIDDEN_SIZE,), jnp.float32,
                            minval=-bound1, maxval=bound1)
    w2 = jax.random.uniform(k3, (OUTPUT_SIZE, HIDDEN_SIZE), jnp.float32,
                            minval=-bound2, maxval=bound2)
    b2 = jax.random.uniform(k4, (OUTPUT_SIZE,), jnp.float32,
                            minval=-bound2, maxval=bound2)
    return w1, b1, w2, b2


def actor_ref(x, w1, b1, w2, b2):
    """Pure-JAX reference (PyTorch semantics: y = x @ W.T + b)."""
    h = jnp.maximum(x @ w1.T + b1, 0.0)
    return h @ w2.T + b2


if __name__ == "__main__":
    key = jax.random.PRNGKey(0)
    k_params, k_x1, k_x2 = jax.random.split(key, 3)
    w1, b1, w2, b2 = init_params(k_params)

    # Small-batch case (matches the module's typical per-step call).
    B_small = 8
    x_small = jax.random.normal(k_x1, (B_small, INPUT_SIZE), jnp.float32)
    out_small = jax.block_until_ready(actor_forward(x_small, w1, b1, w2, b2))
    ref_small = actor_ref(x_small, w1, b1, w2, b2)
    assert out_small.shape == (B_small, OUTPUT_SIZE)
    assert jnp.allclose(out_small, ref_small, atol=1e-4, rtol=1e-4)

    # Larger batch: exercises the batch grid (multiple tiles) and padding path.
    B_big = 2500
    x_big = jax.random.normal(k_x2, (B_big, INPUT_SIZE), jnp.float32)
    out_big = jax.block_until_ready(actor_forward(x_big, w1, b1, w2, b2))
    ref_big = actor_ref(x_big, w1, b1, w2, b2)
    assert out_big.shape == (B_big, OUTPUT_SIZE)
    assert jnp.allclose(out_big, ref_big, atol=1e-4, rtol=1e-4)

    print("KERNEL_OK")
</pallas_src>

<mosaic_0001>
module attributes {stable_mosaic.version = 11 : i64} {
  func.func @actor_kernel(%arg0: i32, %arg1: memref<9x128xf32, #tpu.memory_space<vmem>>, %arg2: memref<64x9xf32, #tpu.memory_space<vmem>>, %arg3: memref<64x1xf32, #tpu.memory_space<vmem>>, %arg4: memref<9x64xf32, #tpu.memory_space<vmem>>, %arg5: memref<9x1xf32, #tpu.memory_space<vmem>>, %arg6: memref<9x128xf32, #tpu.memory_space<vmem>>) attributes {dimension_semantics = [#tpu.dimension_semantics<parallel>], iteration_bounds = array<i64: 1>, scalar_prefetch = 0 : i64, scratch_operands = 0 : i64, tpu.core_type = #tpu.core_type<tc>, window_params = [{transform_indices = @transform_0, window_bounds = array<i64: 9, 128>}, {pipeline_mode = #tpu.pipeline_mode<synchronous>, transform_indices = @transform_1, window_bounds = array<i64: 64, 9>}, {pipeline_mode = #tpu.pipeline_mode<synchronous>, transform_indices = @transform_2, window_bounds = array<i64: 64, 1>}, {pipeline_mode = #tpu.pipeline_mode<synchronous>, transform_indices = @transform_3, window_bounds = array<i64: 9, 64>}, {pipeline_mode = #tpu.pipeline_mode<synchronous>, transform_indices = @transform_4, window_bounds = array<i64: 9, 1>}, {transform_indices = @transform_5, window_bounds = array<i64: 9, 128>}]} {
    %c0 = arith.constant 0 : index
    %c0_0 = arith.constant 0 : index
    %0 = vector.load %arg1[%c0, %c0_0] : memref<9x128xf32, #tpu.memory_space<vmem>>, vector<9x128xf32>
    %c0_1 = arith.constant 0 : index
    %c0_2 = arith.constant 0 : index
    %1 = vector.load %arg2[%c0_1, %c0_2] : memref<64x9xf32, #tpu.memory_space<vmem>>, vector<64x9xf32>
    %cst = arith.constant dense<0.000000e+00> : vector<64x128xf32>
    %2 = tpu.matmul %1, %0, %cst {dimension_numbers = #tpu.dot_dimension_numbers<[1], [0], [0], [1], [0, 0, 1, 1], [], []>} : vector<64x9xf32>, vector<9x128xf32>, vector<64x128xf32> -> vector<64x128xf32>
    %c0_3 = arith.constant 0 : index
    %c0_4 = arith.constant 0 : index
    %3 = vector.load %arg3[%c0_3, %c0_4] : memref<64x1xf32, #tpu.memory_space<vmem>>, vector<64x1xf32>
    %4 = vector.broadcast %3 : vector<64x1xf32> to vector<64x128xf32>
    %5 = arith.addf %2, %4 : vector<64x128xf32>
    %cst_5 = arith.constant 0.000000e+00 : f32
    %6 = vector.broadcast %cst_5 : f32 to vector<64x128xf32>
    %7 = arith.maximumf %5, %6 : vector<64x128xf32>
    %c0_6 = arith.constant 0 : index
    %c0_7 = arith.constant 0 : index
    %8 = vector.load %arg4[%c0_6, %c0_7] : memref<9x64xf32, #tpu.memory_space<vmem>>, vector<9x64xf32>
    %cst_8 = arith.constant dense<0.000000e+00> : vector<9x128xf32>
    %9 = tpu.matmul %8, %7, %cst_8 {dimension_numbers = #tpu.dot_dimension_numbers<[1], [0], [0], [1], [0, 0, 1, 1], [], []>} : vector<9x64xf32>, vector<64x128xf32>, vector<9x128xf32> -> vector<9x128xf32>
    %c0_9 = arith.constant 0 : index
    %c0_10 = arith.constant 0 : index
    %10 = vector.load %arg5[%c0_9, %c0_10] : memref<9x1xf32, #tpu.memory_space<vmem>>, vector<9x1xf32>
    %11 = vector.broadcast %10 : vector<9x1xf32> to vector<9x128xf32>
    %12 = arith.addf %9, %11 : vector<9x128xf32>
    %c0_11 = arith.constant 0 : index
    %c0_12 = arith.constant 0 : index
    %13 = vector.load %arg6[%c0_11, %c0_12] : memref<9x128xf32, #tpu.memory_space<vmem>>, vector<9x128xf32>
    tpu.vector_store %arg6[%c0_11, %c0_12], %12 {strides = array<i32>} : memref<9x128xf32, #tpu.memory_space<vmem>>, vector<9x128xf32>,
    return
  }
  func.func @transform_0(%arg0: i32) -> (i32, i32) {
    %c0_i32 = arith.constant 0 : i32
    %c0_i32_0 = arith.constant 0 : i32
    return %c0_i32, %arg0 : i32, i32
  }
  func.func @transform_1(%arg0: i32) -> (i32, i32) {
    %c0_i32 = arith.constant 0 : i32
    %c0_i32_0 = arith.constant 0 : i32
    %c0_i32_1 = arith.constant 0 : i32
    return %c0_i32, %c0_i32_0 : i32, i32
  }
  func.func @transform_2(%arg0: i32) -> (i32, i32) {
    %c0_i32 = arith.constant 0 : i32
    %c0_i32_0 = arith.constant 0 : i32
    %c0_i32_1 = arith.constant 0 : i32
    return %c0_i32, %c0_i32_0 : i32, i32
  }
  func.func @transform_3(%arg0: i32) -> (i32, i32) {
    %c0_i32 = arith.constant 0 : i32
    %c0_i32_0 = arith.constant 0 : i32
    %c0_i32_1 = arith.constant 0 : i32
    return %c0_i32, %c0_i32_0 : i32, i32
  }
  func.func @transform_4(%arg0: i32) -> (i32, i32) {
    %c0_i32 = arith.constant 0 : i32
    %c0_i32_0 = arith.constant 0 : i32
    %c0_i32_1 = arith.constant 0 : i32
    return %c0_i32, %c0_i32_0 : i32, i32
  }
  func.func @transform_5(%arg0: i32) -> (i32, i32) {
    %c0_i32 = arith.constant 0 : i32
    %c0_i32_0 = arith.constant 0 : i32
    return %c0_i32, %arg0 : i32, i32
  }
}

</mosaic_0001>

<llo_original>
// kernel: tpu_custom_call.1
$region0: #{tpu_custom_call.1}
  #allocation0 [shape = 'u32[]', space=smem, size = 0x4, offset = 0x4, fixed_abs, tag = 'smem constant byte address 0x4 - core index']
  #allocation1 [shape = 'u32[144,128]{1,0:T(1,128)}', space=vmem, size = 0x12000, scoped, tag = 'internal scratch']
  %s0 = inlined_call_operand.vmem [shape: f32[9,128], index: 0, kind: input, shape index: {}]
  %s1 = inlined_call_operand.vmem [shape: f32[64,9], index: 1, kind: input, shape index: {}]
  %s2 = inlined_call_operand.vmem [shape: f32[64,1], index: 2, kind: input, shape index: {}]
  %s3 = inlined_call_operand.vmem [shape: f32[9,64], index: 3, kind: input, shape index: {}]
  %s4 = inlined_call_operand.vmem [shape: f32[9,1], index: 4, kind: input, shape index: {}]
  %s5 = inlined_call_operand.hbm [shape: f32[9,128], index: 5, kind: output, shape index: {}]
  %s6 = sld [smem:[#allocation0]]
  $region30: #{tpu_custom_call.1} parent=0
    _
  %s8 = ssub.s32 1, %s6
  %s9 = scalar_select 0, %s8, %s6
  $region1: #{tpu_custom_call.1} parent=0
    #allocation2 [shape = 'u8[8192]{0}', space=vmem, size = 0x2000, scoped, tag = 'output window, operand 0, single buffered']
    #allocation3 [shape = 's32[1]{0}', space=sflag, size = 0x4, scoped, tag = 'scoped memory for tpu_custom_call.1']
    %10 = vsyncpa [#allocation3], 0
    // Predicated region
    $region2: #{tpu_custom_call.1} parent=1 // pred_check
      _
    $region3: #{tpu_custom_call.1} parent=1 // pred_check_branch
      %12 = sbr.rel (0) target = $region5
    $region4: #{tpu_custom_call.1} parent=1 // pred_region
      _
    $region5: #{tpu_custom_call.1} parent=1 // pred_fallthru
      _
    // Predicated region
    $region6: #{tpu_custom_call.1} parent=1 // pred_check
      _
    $region7: #{tpu_custom_call.1} parent=1 // pred_check_branch
      %14 = sbr.rel (0) target = $region9
    $region8: #{tpu_custom_call.1} parent=1 // pred_region
      _
    $region9: #{tpu_custom_call.1} parent=1 // pred_fallthru
      _
    // Predicated region
    $region10: #{tpu_custom_call.1} parent=1 // pred_check
      _
    $region11: #{tpu_custom_call.1} parent=1 // pred_check_branch
      %16 = sbr.rel (0) target = $region13
    $region12: #{tpu_custom_call.1} parent=1 // pred_region
      _
    $region13: #{tpu_custom_call.1} parent=1 // pred_fallthru
      _
    // Predicated region
    $region14: #{tpu_custom_call.1} parent=1 // pred_check
      _
    $region15: #{tpu_custom_call.1} parent=1 // pred_check_branch
      %18 = sbr.rel (0) target = $region17
    $region16: #{tpu_custom_call.1} parent=1 // pred_region
      _
    $region17: #{tpu_custom_call.1} parent=1 // pred_fallthru
      _
    // Predicated region
    $region18: #{tpu_custom_call.1} parent=1 // pred_check
      _
    $region19: #{tpu_custom_call.1} parent=1 // pred_check_branch
      %20 = sbr.rel (0) target = $region21
    $region20: #{tpu_custom_call.1} parent=1 // pred_region
      _
    $region21: #{tpu_custom_call.1} parent=1 // pred_fallthru
      _
    %v21 = vld [vmem:[%s0] sm:$0xff]
    %v22 = vld [vmem:[%s0 + $0x8] sm:$0x1]
    %v23 = vld [vmem:[%s1] sm:$0xff]
    %v24 = vld [vmem:[%s1 + $0x8] sm:$0xff]
    %v25 = vld [vmem:[%s1 + $0x10] sm:$0xff]
    %v26 = vld [vmem:[%s1 + $0x18] sm:$0xff]
    %v27 = vld [vmem:[%s1 + $0x20] sm:$0xff]
    %v28 = vld [vmem:[%s1 + $0x28] sm:$0xff]
    %v29 = vld [vmem:[%s1 + $0x30] sm:$0xff]
    %v30 = vld [vmem:[%s1 + $0x38] sm:$0xff]
    %v31 = vld [vmem:[%s2] sm:$0xff]
    %v32 = vld [vmem:[%s2 + $0x8] sm:$0xff]
    %v33 = vld [vmem:[%s2 + $0x10] sm:$0xff]
    %v34 = vld [vmem:[%s2 + $0x18] sm:$0xff]
    %v35 = vld [vmem:[%s2 + $0x20] sm:$0xff]
    %v36 = vld [vmem:[%s2 + $0x28] sm:$0xff]
    %v37 = vld [vmem:[%s2 + $0x30] sm:$0xff]
    %v38 = vld [vmem:[%s2 + $0x38] sm:$0xff]
    %40 = vset.pattern.permute.xlu0 0
    %41 = vperm.xlu0 %40, %v31
    %v42 = vpop.permute.xlu0 %41
    %45 = vset.pattern.permute.xlu0 0
    %46 = vperm.xlu0 %45, %v32
    %v47 = vpop.permute.xlu0 %46
    %50 = vset.pattern.permute.xlu0 0
    %51 = vperm.xlu0 %50, %v33
    %v52 = vpop.permute.xlu0 %51
    %55 = vset.pattern.permute.xlu0 0
    %56 = vperm.xlu0 %55, %v34
    %v57 = vpop.permute.xlu0 %56
    %60 = vset.pattern.permute.xlu0 0
    %61 = vperm.xlu0 %60, %v35
    %v62 = vpop.permute.xlu0 %61
    %65 = vset.pattern.permute.xlu0 0
    %66 = vperm.xlu0 %65, %v36
    %v67 = vpop.permute.xlu0 %66
    %70 = vset.pattern.permute.xlu0 0
    %71 = vperm.xlu0 %70, %v37
    %v72 = vpop.permute.xlu0 %71
    %75 = vset.pattern.permute.xlu0 0
    %76 = vperm.xlu0 %75, %v38
    %v77 = vpop.permute.xlu0 %76
    %vm79 = vcmask 72704
    %v81 = vsel %vm79, %v23, 0
    %v84 = vsel %vm79, %v24, 0
    %v87 = vsel %vm79, %v25, 0
    %v90 = vsel %vm79, %v26, 0
    %v93 = vsel %vm79, %v27, 0
    %v96 = vsel %vm79, %v28, 0
    %v99 = vsel %vm79, %v29, 0
    %v102 = vsel %vm79, %v30, 0
    %vm104 = vcmask 1040384
    %v106 = vsel %vm104, %v22, 0
    %108 = vmatprep.subr.mxu0 0.0
    %109 = vmatpush1.msra.mxu0 0.0
    %110 = vmatprep.subr.mxu0 0.0
    %111 = vmatpush1.msra.mxu0 0.0
    %112 = vmatprep.subr.mxu0 0.0
    %113 = vmatpush1.msra.mxu0 0.0
    %114 = vmatprep.subr.mxu0 0.0
    %115 = vmatpush1.msra.mxu0 0.0
    %116 = vmatprep.subr.mxu0 0.0
    %117 = vmatpush1.msra.mxu0 0.0
    %118 = vmatprep.subr.mxu0 0.0
    %119 = vmatpush1.msra.mxu0 0.0
    %120 = vmatprep.subr.mxu0 0.0
    %121 = vmatpush1.msra.mxu0 0.0
    %122 = vmatprep.subr.mxu0 0.0
    %123 = vmatpush1.msra.mxu0 0.0
    %124 = vmatprep.subr.mxu0 0.0
    %125 = vmatpush1.msra.mxu0 0.0
    %126 = vmatprep.subr.mxu0 0.0
    %127 = vmatpush1.msra.mxu0 0.0
    %128 = vmatprep.subr.mxu0 0.0
    %129 = vmatpush1.msra.mxu0 0.0
    %130 = vmatprep.subr.mxu0 0.0
    %131 = vmatpush1.msra.mxu0 0.0
    %132 = vmatprep.subr.mxu0 0.0
    %133 = vmatpush1.msra.mxu0 0.0
    %134 = vmatprep.subr.mxu0 0.0
    %135 = vmatpush1.msra.mxu0 0.0
    %136 = vmatprep.subr.mxu0 0.0
    %137 = vmatpush1.msra.mxu0 %v106
    %138 = vmatprep.subr.mxu0 0.0
    %139 = vmatpush1.msra.mxu0 %v21
    %140 = vmatprep.subr.mxu0 0.0
    %141 = vmatpush2.msra.mxu0 0.0
    %142 = vmatprep.subr.mxu0 0.0
    %143 = vmatpush2.msra.mxu0 0.0
    %144 = vmatprep.subr.mxu0 0.0
    %145 = vmatpush2.msra.mxu0 0.0
    %146 = vmatprep.subr.mxu0 0.0
    %147 = vmatpush2.msra.mxu0 0.0
    %148 = vmatprep.subr.mxu0 0.0
    %149 = vmatpush2.msra.mxu0 0.0
    %150 = vmatprep.subr.mxu0 0.0
    %151 = vmatpush2.msra.mxu0 0.0
    %152 = vmatprep.subr.mxu0 0.0
    %153 = vmatpush2.msra.mxu0 0.0
    %154 = vmatprep.subr.mxu0 0.0
    %155 = vmatpush2.msra.mxu0 0.0
    %156 = vmatprep.subr.mxu0 0.0
    %157 = vmatpush2.msra.mxu0 0.0
    %158 = vmatprep.subr.mxu0 0.0
    %159 = vmatpush2.msra.mxu0 0.0
    %160 = vmatprep.subr.mxu0 0.0
    %161 = vmatpush2.msra.mxu0 0.0
    %162 = vmatprep.subr.mxu0 0.0
    %163 = vmatpush2.msra.mxu0 0.0
    %164 = vmatprep.subr.mxu0 0.0
    %165 = vmatpush2.msra.mxu0 0.0
    %166 = vmatprep.subr.mxu0 0.0
    %167 = vmatpush2.msra.mxu0 0.0
    %168 = vmatprep.subr.mxu0 0.0
    %169 = vmatpush2.msra.mxu0 0.0
    %170 = vmatprep.subr.mxu0 0.0
    %171 = vmatpush2.msra.mxu0 0.0
    %172 = vmatprep.mubr.f32.mxu0 0.0
    %173 = vmatmul.mubr.f32.gmra.mxu0 %v81
    %v174 = vpop.f32.mrf.mxu0
    %v175 = vadd.f32 %v42, %v174
    %v176 = vpop.f32.mrf.mxu0
    %177 = vmatprep.mubr.f32.mxu0 0.0
    %178 = vmatmul.mubr.f32.gmra.mxu0 %v84
    %v179 = vpop.f32.mrf.mxu0
    %v180 = vadd.f32 %v47, %v179
    %v181 = vpop.f32.mrf.mxu0
    %182 = vmatprep.mubr.f32.mxu0 0.0
    %183 = vmatmul.mubr.f32.gmra.mxu0 %v87
    %v184 = vpop.f32.mrf.mxu0
    %v185 = vadd.f32 %v52, %v184
    %v186 = vpop.f32.mrf.mxu0
    %187 = vmatprep.mubr.f32.mxu0 0.0
    %188 = vmatmul.mubr.f32.gmra.mxu0 %v90
    %v189 = vpop.f32.mrf.mxu0
    %v190 = vadd.f32 %v57, %v189
    %v191 = vpop.f32.mrf.mxu0
    %192 = vmatprep.mubr.f32.mxu0 0.0
    %193 = vmatmul.mubr.f32.gmra.mxu0 %v93
    %v194 = vpop.f32.mrf.mxu0
    %v195 = vadd.f32 %v62, %v194
    %v196 = vpop.f32.mrf.mxu0
    %197 = vmatprep.mubr.f32.mxu0 0.0
    %198 = vmatmul.mubr.f32.gmra.mxu0 %v96
    %v199 = vpop.f32.mrf.mxu0
    %v200 = vadd.f32 %v67, %v199
    %v201 = vpop.f32.mrf.mxu0
    %202 = vmatprep.mubr.f32.mxu0 0.0
    %203 = vmatmul.mubr.f32.gmra.mxu0 %v99
    %v204 = vpop.f32.mrf.mxu0
    %v205 = vadd.f32 %v72, %v204
    %v206 = vpop.f32.mrf.mxu0
    %207 = vmatprep.mubr.f32.mxu0 0.0
    %208 = vmatmul.mubr.f32.gmra.mxu0 %v102
    %v209 = vpop.f32.mrf.mxu0
    %v210 = vadd.f32 %v77, %v209
    %v211 = vpop.f32.mrf.mxu0
    %212 = vdwg.mxu0
    %v213 = vmax.f32 %v175, 0.0
    %v214 = vmax.f32 %v180, 0.0
    %v215 = vmax.f32 %v185, 0.0
    %v216 = vmax.f32 %v190, 0.0
    %v217 = vmax.f32 %v195, 0.0
    %v218 = vmax.f32 %v200, 0.0
    %v219 = vmax.f32 %v205, 0.0
    %v220 = vmax.f32 %v210, 0.0
    %v221 = vld [vmem:[%s3] sm:$0xff]
    %v222 = vld [vmem:[%s3 + $0x8] sm:$0x1]
    %v223 = vld [vmem:[%s4] sm:$0xff]
    %v224 = vld [vmem:[%s4 + $0x8] sm:$0x1]
    %226 = vset.pattern.permute.xlu0 0
    %227 = vperm.xlu0 %226, %v223
    %v228 = vpop.permute.xlu0 %227
    %231 = vset.pattern.permute.xlu0 0
    %232 = vperm.xlu0 %231, %v224
    %v233 = vpop.permute.xlu0 %232
    %vm235 = vcmask 523264
    %v237 = vsel %vm235, %v221, 0
    %v240 = vsel %vm235, %v222, 0
    %242 = vmatprep.subr.mxu0 0.0
    %243 = vmatpush1.msra.mxu0 0.0
    %244 = vmatprep.subr.mxu0 0.0
    %245 = vmatpush1.msra.mxu0 0.0
    %246 = vmatprep.subr.mxu0 0.0
    %247 = vmatpush1.msra.mxu0 0.0
    %248 = vmatprep.subr.mxu0 0.0
    %249 = vmatpush1.msra.mxu0 0.0
    %250 = vmatprep.subr.mxu0 0.0
    %251 = vmatpush1.msra.mxu0 0.0
    %252 = vmatprep.subr.mxu0 0.0
    %253 = vmatpush1.msra.mxu0 0.0
    %254 = vmatprep.subr.mxu0 0.0
    %255 = vmatpush1.msra.mxu0 0.0
    %256 = vmatprep.subr.mxu0 0.0
    %257 = vmatpush1.msra.mxu0 0.0
    %258 = vmatprep.subr.mxu0 0.0
    %259 = vmatpush1.msra.mxu0 %v220
    %260 = vmatprep.subr.mxu0 0.0
    %261 = vmatpush1.msra.mxu0 %v219
    %262 = vmatprep.subr.mxu0 0.0
    %263 = vmatpush1.msra.mxu0 %v218
    %264 = vmatprep.subr.mxu0 0.0
    %265 = vmatpush1.msra.mxu0 %v217
    %266 = vmatprep.subr.mxu0 0.0
    %267 = vmatpush1.msra.mxu0 %v216
    %268 = vmatprep.subr.mxu0 0.0
    %269 = vmatpush1.msra.mxu0 %v215
    %270 = vmatprep.subr.mxu0 0.0
    %271 = vmatpush1.msra.mxu0 %v214
    %272 = vmatprep.subr.mxu0 0.0
    %273 = vmatpush1.msra.mxu0 %v213
    %274 = vmatprep.subr.mxu0 0.0
    %275 = vmatpush2.msra.mxu0 0.0
    %276 = vmatprep.subr.mxu0 0.0
    %277 = vmatpush2.msra.mxu0 0.0
    %278 = vmatprep.subr.mxu0 0.0
    %279 = vmatpush2.msra.mxu0 0.0
    %280 = vmatprep.subr.mxu0 0.0
    %281 = vmatpush2.msra.mxu0 0.0
    %282 = vmatprep.subr.mxu0 0.0
    %283 = vmatpush2.msra.mxu0 0.0
    %284 = vmatprep.subr.mxu0 0.0
    %285 = vmatpush2.msra.mxu0 0.0
    %286 = vmatprep.subr.mxu0 0.0
    %287 = vmatpush2.msra.mxu0 0.0
    %288 = vmatprep.subr.mxu0 0.0
    %289 = vmatpush2.msra.mxu0 0.0
    %290 = vmatprep.subr.mxu0 0.0
    %291 = vmatpush2.msra.mxu0 0.0
    %292 = vmatprep.subr.mxu0 0.0
    %293 = vmatpush2.msra.mxu0 0.0
    %294 = vmatprep.subr.mxu0 0.0
    %295 = vmatpush2.msra.mxu0 0.0
    %296 = vmatprep.subr.mxu0 0.0
    %297 = vmatpush2.msra.mxu0 0.0
    %298 = vmatprep.subr.mxu0 0.0
    %299 = vmatpush2.msra.mxu0 0.0
    %300 = vmatprep.subr.mxu0 0.0
    %301 = vmatpush2.msra.mxu0 0.0
    %302 = vmatprep.subr.mxu0 0.0
    %303 = vmatpush2.msra.mxu0 0.0
    %304 = vmatprep.subr.mxu0 0.0
    %305 = vmatpush2.msra.mxu0 0.0
    %306 = vmatprep.mubr.f32.mxu0 0.0
    %307 = vmatmul.mubr.f32.gmra.mxu0 %v237
    %v308 = vpop.f32.mrf.mxu0
    %v309 = vadd.f32 %v228, %v308
    %v310 = vpop.f32.mrf.mxu0
    %311 = vmatprep.mubr.f32.mxu0 0.0
    %312 = vmatmul.mubr.f32.gmra.mxu0 %v240
    %v313 = vpop.f32.mrf.mxu0
    %v314 = vadd.f32 %v233, %v313
    %v315 = vpop.f32.mrf.mxu0
    %316 = vdwg.mxu0
    %317 = vst [vmem:[#allocation2] sm:$0xff] %v309
    %318 = vst [vmem:[#allocation2 + $0x8] sm:$0x1] %v314
    // Predicated region
    $region22: #{tpu_custom_call.1} parent=1 // pred_check
      _
    $region23: #{tpu_custom_call.1} parent=1 // pred_check_branch
      %320 = sbr.rel (0) target = $region25
    $region24: #{tpu_custom_call.1} parent=1 // pred_region
      %s322 = ssub.s32 256, 256
      %323 = vsyncadd [#allocation3], %s322
      %s324 = sshll.u32 [#allocation2], 4
      %s325 = int_to_ptr.vmem [resolvable:$true] %s324
      %330 = dma.vmem_to_hbm [thread:$0]  %s325, 256, %s5, [#allocation3], 128, 128, 8
    $region25: #{tpu_custom_call.1} parent=1 // pred_fallthru
      _
    // Predicated region
    $region26: #{tpu_custom_call.1} parent=1 // pred_check
      _
    $region27: #{tpu_custom_call.1} parent=1 // pred_check_branch
      %332 = sbr.rel (0) target = $region29
    $region28: #{tpu_custom_call.1} parent=1 // pred_region
      %333 = dma.done [#allocation3], 256
    $region29: #{tpu_custom_call.1} parent=1 // pred_fallthru
      _
    %334 = vsyncpa [#allocation3], 1

</llo_original>
